<compile_context>
chip_gen: v7x
topology: tpu7x:2x2x1
jax: 0.10.0
libtpu: 0.0.40
codegen_flags: <defaults>
</compile_context>

<pallas_src>
import functools

import jax
import jax.numpy as jnp
import numpy as np
from jax.experimental import pallas as pl
from jax.experimental.pallas import tpu as pltpu

EPS = 1e-12  # matches torch.nn.functional.normalize default eps


def _l2norm(x):
    # x / max(||x||, EPS)  ==  x * rsqrt(max(||x||^2, EPS^2))   (EUP rsqrt)
    ss = jnp.sum(x * x, axis=-1, keepdims=True)
    return x * jax.lax.rsqrt(jnp.maximum(ss, EPS * EPS))


def _ver2f_kernel(x_ref, w_ref, b_ref, tbl_ref, out_ref,
                  m_ref, se_ref, ses_ref, *, t, c, lanes):
    nt = pl.program_id(1)

    @pl.when(nt == 0)
    def _init():
        m_ref[...] = jnp.full(m_ref.shape, -jnp.inf, jnp.float32)
        se_ref[...] = jnp.zeros(se_ref.shape, jnp.float32)
        ses_ref[...] = jnp.zeros(ses_ref.shape, jnp.float32)

    # x arrives in its native dtype; upcast to f32 only for the normalize.
    x = x_ref[0].astype(jnp.float32)                         # (tn, D)
    xn = _l2norm(x)                                          # F.normalize(x, -1)

    # visual_proj: (tn, D) x (D, D) MXU matmul, f32 accumulate, f32 bias add.
    proj = jnp.dot(xn.astype(w_ref.dtype), w_ref[...],
                   preferred_element_type=jnp.float32) + b_ref[...]
    pn = _l2norm(proj)                                       # normalized projection

    # One fused (tn, D) x (D, lanes) matmul: lanes [0:T] hold patch/description
    # similarities, lanes [T:T+C] hold per-class scores (the per-class mean over
    # description segments is folded into the table in the wrapper), rest zero.
    s = jnp.dot(pn.astype(tbl_ref.dtype), tbl_ref[...],
                preferred_element_type=jnp.float32)          # (tn, lanes)

    # Online softmax-over-patches accumulation, identical per lane for both the
    # slide pooling and the class attention pooling:
    #   sum_N(softmax(s) * s) == (Σ e·s) / (Σ e)   with running max m.
    m_old = m_ref[...]
    m_new = jnp.maximum(m_old, jnp.max(s, axis=0, keepdims=True))
    alpha = jnp.exp(m_old - m_new)
    e = jnp.exp(s - m_new)
    se_ref[...] = alpha * se_ref[...] + jnp.sum(e, axis=0, keepdims=True)
    ses_ref[...] = alpha * ses_ref[...] + jnp.sum(e * s, axis=0, keepdims=True)
    m_ref[...] = m_new

    @pl.when(nt == pl.num_programs(1) - 1)
    def _finalize():
        pooled = ses_ref[...] / se_ref[...]                  # (1, lanes)
        lane = jax.lax.broadcasted_iota(jnp.int32, (1, lanes), 1)
        is_cls = jnp.logical_and(lane >= t, lane < t + c)
        # softmax over the C class lanes, mask-style (no lane slicing/concat)
        ml = jnp.max(jnp.where(is_cls, pooled, -jnp.inf), axis=-1, keepdims=True)
        el = jnp.where(is_cls, jnp.exp(pooled - ml), 0.0)
        yprob = el / jnp.sum(el, axis=-1, keepdims=True)
        # packed row: [slide (T) | Y_prob (C) | zero pad], single lane-dense store
        packed = jnp.where(is_cls, yprob, jnp.where(lane < t, pooled, 0.0))
        out_ref[...] = packed[None]


def _pick_vmem_limit_bytes():
    try:
        kind = jax.devices()[0].device_kind.lower()
    except Exception:
        kind = ""
    if "v7" in kind:
        return 56 * 1024 * 1024      # 64 MiB physical: leave headroom
    if "v5" in kind or "v6" in kind:
        return 96 * 1024 * 1024      # 128 MiB physical: allow large N tiles
    return 48 * 1024 * 1024


def _pick_n_tile(n, d, itemsize, max_bytes=4 << 20):
    """Largest patch tile (sublane-quantum multiple, dividing n) whose x block
    stays under ~max_bytes so double-buffering fits comfortably in VMEM."""
    sub = 8 if itemsize >= 4 else (16 if itemsize == 2 else 32)
    cap = max(sub, max_bytes // max(1, d * itemsize))
    if n <= cap:
        return n
    tn = (min(cap, n) // sub) * sub
    while tn > sub and n % tn != 0:
        tn -= sub
    return tn if (tn >= sub and n % tn == 0) else n


def ver2f_forward(x_s, coord_s, x_l, coord_l, w_t, bias, desc_feats, seg_map,
                  label=None, *, mxu_dtype=jnp.float32, n_tile=None):
    """Ver2f.forward.

    x_s: [B, N, D] (or [N, D]) patch features; coord_s / x_l / coord_l are
    accepted but unused by the compute path, exactly as in the reference.
    w_t: (D_in, D_out) visual_proj weight (pre-transposed); bias: (D,)/(1, D).
    desc_feats: (T, D) description text features; seg_map: (T, C) with entries
    1/count_c implementing the per-class mean over each description slice.
    """
    if x_s.ndim == 2:
        x_s = x_s[None]
        x_l = x_l[None]
        coord_s = coord_s[None]
        coord_l = coord_l[None]
    B, N, D = x_s.shape
    T, C = seg_map.shape
    if bias.ndim == 1:
        bias = bias[None, :]

    lanes = max(128, pl.cdiv(T + C, 128) * 128)

    # Grid-invariant prep, done once outside the kernel:
    #  * L2-normalize description features (module invariant),
    #  * pre-transpose to (D, T),
    #  * fold the per-class segment mean into (D, C),
    #  * fuse both into one lane-padded (D, lanes) table.
    desc_n = desc_feats / jnp.maximum(
        jnp.linalg.norm(desc_feats, axis=-1, keepdims=True), EPS)
    descT = desc_n.T.astype(jnp.float32)                     # (D, T)
    clsT = descT @ seg_map.astype(jnp.float32)               # (D, C)
    tbl = jnp.zeros((D, lanes), jnp.float32)
    tbl = tbl.at[:, :T].set(descT).at[:, T:T + C].set(clsT)

    itemsize = jnp.dtype(x_s.dtype).itemsize
    tn = _pick_n_tile(N, D, itemsize) if n_tile is None else n_tile
    assert N % tn == 0, "n_tile must divide N"
    n_tiles = N // tn

    kernel = functools.partial(_ver2f_kernel, t=T, c=C, lanes=lanes)

    grid_spec = pltpu.PrefetchScalarGridSpec(
        num_scalar_prefetch=0,
        grid=(B, n_tiles),                                   # (parallel, arbitrary)
        in_specs=[
            pl.BlockSpec((1, tn, D), lambda b, k: (b, k, 0)),   # patches (native dtype)
            pl.BlockSpec((D, D), lambda b, k: (0, 0)),          # visual_proj W^T
            pl.BlockSpec((1, D), lambda b, k: (0, 0)),          # visual_proj bias
            pl.BlockSpec((D, lanes), lambda b, k: (0, 0)),      # fused desc+class table
        ],
        out_specs=pl.BlockSpec((1, 1, lanes), lambda b, k: (b, 0, 0)),
        scratch_shapes=[pltpu.VMEM((1, lanes), jnp.float32)] * 3,  # m, Σe, Σe·s
    )
    packed = pl.pallas_call(
        kernel,
        out_shape=jax.ShapeDtypeStruct((B, 1, lanes), jnp.float32),
        grid_spec=grid_spec,
        compiler_params=pltpu.CompilerParams(
            dimension_semantics=("parallel", "arbitrary"),
            vmem_limit_bytes=_pick_vmem_limit_bytes()),
    )(x_s, w_t.astype(mxu_dtype), bias.astype(jnp.float32), tbl.astype(mxu_dtype))

    slide_score = packed[:, :, :T]                           # (B, 1, T)
    y_prob = packed[:, 0, T:T + C]                           # (B, C)
    y_hat = jnp.argmax(y_prob, axis=1)
    loss = None
    if label is not None:
        # CE(logits, label) == -log softmax(logits)[label] == -log Y_prob[label]
        p = y_prob[jnp.arange(B), label]
        loss = -jnp.mean(jnp.log(jnp.maximum(p, 1e-30)))
    return y_prob, y_hat, loss, slide_score


def reference_forward(x, w_t, bias, desc, seg):
    def nrm(a):
        n = jnp.linalg.norm(a, axis=-1, keepdims=True)
        return a / jnp.maximum(n, EPS)
    xn = nrm(x)
    pn = nrm(xn @ w_t + bias)
    dn = nrm(desc)
    sim = jnp.einsum('bnd,td->bnt', pn, dn)
    w = jax.nn.softmax(sim, axis=1)
    slide = jnp.sum(w * sim, axis=1, keepdims=True)
    cls = jnp.einsum('bnt,tc->bnc', sim, seg)
    attn = jax.nn.softmax(cls, axis=1)
    logits = jnp.sum(attn * cls, axis=1)
    yprob = jax.nn.softmax(logits, axis=1)
    yhat = jnp.argmax(yprob, axis=1)
    return yprob, yhat, logits, slide


if __name__ == "__main__":
    # Small, module-consistent shapes: B batches, N patches, D feature dim,
    # C classes with 2 descriptions each -> T = 8 description prompts.
    B, N, D = 2, 16, 32
    C = 4
    descs_per_class = 2
    T = C * descs_per_class

    key = jax.random.PRNGKey(0)
    k_x, k_xl, k_w, k_b, k_d = jax.random.split(key, 5)

    x_s = jax.random.normal(k_x, (B, N, D), dtype=jnp.float32)
    x_l = jax.random.normal(k_xl, (B, N, D), dtype=jnp.float32)   # unused by forward
    coord_s = jnp.zeros((B, N, 2), dtype=jnp.float32)             # unused by forward
    coord_l = jnp.zeros((B, N, 2), dtype=jnp.float32)             # unused by forward

    # visual_proj (Linear D->D): deterministic synthetic parameters.
    w = jax.random.normal(k_w, (D, D), dtype=jnp.float32) * 0.1   # (out, in)
    w_t = w.T                                                     # kernel does x @ W^T
    bias = (jax.random.normal(k_b, (D,), dtype=jnp.float32) * 0.05)[None, :]

    # Stored description text features are L2-normalized (as encode_text returns).
    desc_raw = jax.random.normal(k_d, (T, D), dtype=jnp.float32)
    desc_feats = desc_raw / jnp.maximum(
        jnp.linalg.norm(desc_raw, axis=-1, keepdims=True), EPS)

    # class_to_desc_idx: class c owns descriptions [c*2, c*2+2) -> mean via seg map.
    seg_np = np.zeros((T, C), dtype=np.float32)
    for cc in range(C):
        s, e = cc * descs_per_class, (cc + 1) * descs_per_class
        seg_np[s:e, cc] = 1.0 / (e - s)
    seg_map = jnp.asarray(seg_np)

    # --- f32 MXU path (exact module semantics) ---
    yprob, yhat, loss, slide = ver2f_forward(
        x_s, coord_s, x_l, coord_l, w_t, bias, desc_feats, seg_map)
    jax.block_until_ready((yprob, yhat, slide))

    rp, rh, rlogits, rs = reference_forward(x_s, w_t, bias, desc_feats, seg_map)
    rp_np = np.asarray(rp)
    np.testing.assert_allclose(np.asarray(yprob), rp_np, atol=1e-4, rtol=1e-4)
    np.testing.assert_allclose(np.asarray(slide), np.asarray(rs), atol=1e-4, rtol=1e-4)
    # argmax check only where the reference top-2 margin is unambiguous
    top2 = np.sort(rp_np, axis=1)
    safe = (top2[:, -1] - top2[:, -2]) > 1e-3
    assert np.array_equal(np.asarray(yhat)[safe], np.asarray(rh)[safe])
    assert loss is None
    assert yprob.shape == (B, C) and yhat.shape == (B,) and slide.shape == (B, 1, T)

    # --- CE-loss path (label provided) ---
    label = jnp.array([0, 1], dtype=jnp.int32)
    _, _, loss_l, _ = ver2f_forward(
        x_s, coord_s, x_l, coord_l, w_t, bias, desc_feats, seg_map, label=label)
    ref_ce = -jnp.mean(jax.nn.log_softmax(rlogits, axis=1)[jnp.arange(B), label])
    np.testing.assert_allclose(np.asarray(loss_l), np.asarray(ref_ce),
                               atol=1e-4, rtol=1e-4)

    # --- bf16 path (v6e/v7x fast path): bf16 x in HBM + bf16 MXU operands,
    #     f32 VPU/EUP math and f32 accumulation; loose-tolerance smoke check ---
    yprob_bf, _, _, slide_bf = ver2f_forward(
        x_s.astype(jnp.bfloat16), coord_s, x_l, coord_l, w_t, bias,
        desc_feats, seg_map, mxu_dtype=jnp.bfloat16)
    jax.block_until_ready((yprob_bf, slide_bf))
    np.testing.assert_allclose(np.asarray(yprob_bf), rp_np, atol=5e-2, rtol=5e-2)
    np.testing.assert_allclose(np.asarray(slide_bf), np.asarray(rs),
                               atol=5e-2, rtol=5e-2)

    print("KERNEL_OK")
</pallas_src>

<mosaic_0001>
module attributes {stable_mosaic.version = 11 : i64} {
  func.func @_ver2f_kernel(%arg0: i32, %arg1: i32, %arg2: memref<1x16x32xf32, #tpu.memory_space<vmem>>, %arg3: memref<32x32xf32, #tpu.memory_space<vmem>>, %arg4: memref<1x32xf32, #tpu.memory_space<vmem>>, %arg5: memref<32x128xf32, #tpu.memory_space<vmem>>, %arg6: memref<1x1x128xf32, #tpu.memory_space<vmem>>, %arg7: memref<1x128xf32, #tpu.memory_space<vmem>>, %arg8: memref<1x128xf32, #tpu.memory_space<vmem>>, %arg9: memref<1x128xf32, #tpu.memory_space<vmem>>) attributes {dimension_semantics = [#tpu.dimension_semantics<parallel>, #tpu.dimension_semantics<arbitrary>], iteration_bounds = array<i64: 2, 1>, scalar_prefetch = 0 : i64, scratch_operands = 3 : i64, tpu.core_type = #tpu.core_type<tc>, window_params = [{transform_indices = @transform_0, window_bounds = array<i64: 1, 16, 32>}, {pipeline_mode = #tpu.pipeline_mode<synchronous>, transform_indices = @transform_1, window_bounds = array<i64: 32, 32>}, {pipeline_mode = #tpu.pipeline_mode<synchronous>, transform_indices = @transform_2, window_bounds = array<i64: 1, 32>}, {pipeline_mode = #tpu.pipeline_mode<synchronous>, transform_indices = @transform_3, window_bounds = array<i64: 32, 128>}, {transform_indices = @transform_4, window_bounds = array<i64: 1, 1, 128>}]} {
    %c0_i32 = arith.constant 0 : i32
    %0 = arith.cmpi eq, %arg1, %c0_i32 : i32
    %1 = arith.extui %0 : i1 to i32
    %c0_i32_0 = arith.constant 0 : i32
    %2 = arith.cmpi ne, %1, %c0_i32_0 : i32
    scf.if %2 {
      %cst_31 = arith.constant 0xFF800000 : f32
      %54 = vector.broadcast %cst_31 : f32 to vector<1x128xf32>
      %c0_32 = arith.constant 0 : index
      %c0_33 = arith.constant 0 : index
      %55 = vector.load %arg7[%c0_32, %c0_33] : memref<1x128xf32, #tpu.memory_space<vmem>>, vector<1x128xf32>
      tpu.vector_store %arg7[%c0_32, %c0_33], %54 {strides = array<i32>} : memref<1x128xf32, #tpu.memory_space<vmem>>, vector<1x128xf32>,
      %cst_34 = arith.constant 0.000000e+00 : f32
      %56 = vector.broadcast %cst_34 : f32 to vector<1x128xf32>
      %c0_35 = arith.constant 0 : index
      %c0_36 = arith.constant 0 : index
      %57 = vector.load %arg8[%c0_35, %c0_36] : memref<1x128xf32, #tpu.memory_space<vmem>>, vector<1x128xf32>
      tpu.vector_store %arg8[%c0_35, %c0_36], %56 {strides = array<i32>} : memref<1x128xf32, #tpu.memory_space<vmem>>, vector<1x128xf32>,
      %cst_37 = arith.constant 0.000000e+00 : f32
      %58 = vector.broadcast %cst_37 : f32 to vector<1x128xf32>
      %c0_38 = arith.constant 0 : index
      %c0_39 = arith.constant 0 : index
      %59 = vector.load %arg9[%c0_38, %c0_39] : memref<1x128xf32, #tpu.memory_space<vmem>>, vector<1x128xf32>
      tpu.vector_store %arg9[%c0_38, %c0_39], %58 {strides = array<i32>} : memref<1x128xf32, #tpu.memory_space<vmem>>, vector<1x128xf32>,
    } else {
    }
    %c0 = arith.constant 0 : index
    %c0_1 = arith.constant 0 : index
    %c0_2 = arith.constant 0 : index
    %3 = vector.load %arg2[%c0, %c0_1, %c0_2] : memref<1x16x32xf32, #tpu.memory_space<vmem>>, vector<1x16x32xf32>
    %4 = vector.shape_cast %3 : vector<1x16x32xf32> to vector<16x32xf32>
    %5 = arith.mulf %4, %4 : vector<16x32xf32>
    %cst = arith.constant dense<0.000000e+00> : vector<16xf32>
    %6 = vector.multi_reduction <add>, %5, %cst [1] : vector<16x32xf32> to vector<16xf32>
    %7 = vector.shape_cast %6 : vector<16xf32> to vector<16x1xf32>
    %cst_3 = arith.constant 1.000000e-24 : f32
    %8 = vector.broadcast %cst_3 : f32 to vector<16x1xf32>
    %9 = arith.maximumf %7, %8 : vector<16x1xf32>
    %10 = math.rsqrt %9 : vector<16x1xf32>
    %11 = vector.broadcast %10 : vector<16x1xf32> to vector<16x32xf32>
    %12 = arith.mulf %4, %11 : vector<16x32xf32>
    %c0_4 = arith.constant 0 : index
    %c0_5 = arith.constant 0 : index
    %13 = vector.load %arg3[%c0_4, %c0_5] : memref<32x32xf32, #tpu.memory_space<vmem>>, vector<32x32xf32>
    %cst_6 = arith.constant dense<0.000000e+00> : vector<16x32xf32>
    %14 = tpu.matmul %12, %13, %cst_6 {dimension_numbers = #tpu.dot_dimension_numbers<[1], [0], [0], [1], [0, 0, 1, 1], [], []>} : vector<16x32xf32>, vector<32x32xf32>, vector<16x32xf32> -> vector<16x32xf32>
    %c0_7 = arith.constant 0 : index
    %c0_8 = arith.constant 0 : index
    %15 = vector.load %arg4[%c0_7, %c0_8] : memref<1x32xf32, #tpu.memory_space<vmem>>, vector<1x32xf32>
    %16 = vector.broadcast %15 : vector<1x32xf32> to vector<16x32xf32>
    %17 = arith.addf %14, %16 : vector<16x32xf32>
    %18 = arith.mulf %17, %17 : vector<16x32xf32>
    %cst_9 = arith.constant dense<0.000000e+00> : vector<16xf32>
    %19 = vector.multi_reduction <add>, %18, %cst_9 [1] : vector<16x32xf32> to vector<16xf32>
    %20 = vector.shape_cast %19 : vector<16xf32> to vector<16x1xf32>
    %cst_10 = arith.constant 1.000000e-24 : f32
    %21 = vector.broadcast %cst_10 : f32 to vector<16x1xf32>
    %22 = arith.maximumf %20, %21 : vector<16x1xf32>
    %23 = math.rsqrt %22 : vector<16x1xf32>
    %24 = vector.broadcast %23 : vector<16x1xf32> to vector<16x32xf32>
    %25 = arith.mulf %17, %24 : vector<16x32xf32>
    %c0_11 = arith.constant 0 : index
    %c0_12 = arith.constant 0 : index
    %26 = vector.load %arg5[%c0_11, %c0_12] : memref<32x128xf32, #tpu.memory_space<vmem>>, vector<32x128xf32>
    %cst_13 = arith.constant dense<0.000000e+00> : vector<16x128xf32>
    %27 = tpu.matmul %25, %26, %cst_13 {dimension_numbers = #tpu.dot_dimension_numbers<[1], [0], [0], [1], [0, 0, 1, 1], [], []>} : vector<16x32xf32>, vector<32x128xf32>, vector<16x128xf32> -> vector<16x128xf32>
    %c0_14 = arith.constant 0 : index
    %c0_15 = arith.constant 0 : index
    %28 = vector.load %arg7[%c0_14, %c0_15] : memref<1x128xf32, #tpu.memory_space<vmem>>, vector<1x128xf32>
    %cst_16 = arith.constant dense<0xFF800000> : vector<128xf32>
    %29 = vector.multi_reduction <maximumf>, %27, %cst_16 [0] : vector<16x128xf32> to vector<128xf32>
    %30 = vector.shape_cast %29 : vector<128xf32> to vector<1x128xf32>
    %31 = arith.maximumf %28, %30 : vector<1x128xf32>
    %32 = arith.subf %28, %31 : vector<1x128xf32>
    %33 = math.exp %32 : vector<1x128xf32>
    %34 = vector.broadcast %31 : vector<1x128xf32> to vector<16x128xf32>
    %35 = arith.subf %27, %34 : vector<16x128xf32>
    %36 = math.exp %35 : vector<16x128xf32>
    %c0_17 = arith.constant 0 : index
    %c0_18 = arith.constant 0 : index
    %37 = vector.load %arg8[%c0_17, %c0_18] : memref<1x128xf32, #tpu.memory_space<vmem>>, vector<1x128xf32>
    %38 = arith.mulf %33, %37 : vector<1x128xf32>
    %cst_19 = arith.constant dense<0.000000e+00> : vector<128xf32>
    %39 = vector.multi_reduction <add>, %36, %cst_19 [0] : vector<16x128xf32> to vector<128xf32>
    %40 = vector.shape_cast %39 : vector<128xf32> to vector<1x128xf32>
    %41 = arith.addf %38, %40 : vector<1x128xf32>
    %c0_20 = arith.constant 0 : index
    %c0_21 = arith.constant 0 : index
    %42 = vector.load %arg8[%c0_20, %c0_21] : memref<1x128xf32, #tpu.memory_space<vmem>>, vector<1x128xf32>
    tpu.vector_store %arg8[%c0_20, %c0_21], %41 {strides = array<i32>} : memref<1x128xf32, #tpu.memory_space<vmem>>, vector<1x128xf32>,
    %c0_22 = arith.constant 0 : index
    %c0_23 = arith.constant 0 : index
    %43 = vector.load %arg9[%c0_22, %c0_23] : memref<1x128xf32, #tpu.memory_space<vmem>>, vector<1x128xf32>
    %44 = arith.mulf %33, %43 : vector<1x128xf32>
    %45 = arith.mulf %36, %27 : vector<16x128xf32>
    %cst_24 = arith.constant dense<0.000000e+00> : vector<128xf32>
    %46 = vector.multi_reduction <add>, %45, %cst_24 [0] : vector<16x128xf32> to vector<128xf32>
    %47 = vector.shape_cast %46 : vector<128xf32> to vector<1x128xf32>
    %48 = arith.addf %44, %47 : vector<1x128xf32>
    %c0_25 = arith.constant 0 : index
    %c0_26 = arith.constant 0 : index
    %49 = vector.load %arg9[%c0_25, %c0_26] : memref<1x128xf32, #tpu.memory_space<vmem>>, vector<1x128xf32>
    tpu.vector_store %arg9[%c0_25, %c0_26], %48 {strides = array<i32>} : memref<1x128xf32, #tpu.memory_space<vmem>>, vector<1x128xf32>,
    %c0_27 = arith.constant 0 : index
    %c0_28 = arith.constant 0 : index
    %50 = vector.load %arg7[%c0_27, %c0_28] : memref<1x128xf32, #tpu.memory_space<vmem>>, vector<1x128xf32>
    tpu.vector_store %arg7[%c0_27, %c0_28], %31 {strides = array<i32>} : memref<1x128xf32, #tpu.memory_space<vmem>>, vector<1x128xf32>,
    %c0_i32_29 = arith.constant 0 : i32
    %51 = arith.cmpi eq, %arg1, %c0_i32_29 : i32
    %52 = arith.extui %51 : i1 to i32
    %c0_i32_30 = arith.constant 0 : i32
    %53 = arith.cmpi ne, %52, %c0_i32_30 : i32
    scf.if %53 {
      %c0_31 = arith.constant 0 : index
      %c0_32 = arith.constant 0 : index
      %54 = vector.load %arg9[%c0_31, %c0_32] : memref<1x128xf32, #tpu.memory_space<vmem>>, vector<1x128xf32>
      %c0_33 = arith.constant 0 : index
      %c0_34 = arith.constant 0 : index
      %55 = vector.load %arg8[%c0_33, %c0_34] : memref<1x128xf32, #tpu.memory_space<vmem>>, vector<1x128xf32>
      %56 = arith.divf %54, %55 : vector<1x128xf32>
      %57 = tpu.iota {dimensions = array<i32: 1>} : vector<1x128xi32>
      %c8_i32 = arith.constant 8 : i32
      %58 = vector.broadcast %c8_i32 : i32 to vector<1x128xi32>
      %59 = arith.cmpi sge, %57, %58 : vector<1x128xi32>
      %c12_i32 = arith.constant 12 : i32
      %60 = vector.broadcast %c12_i32 : i32 to vector<1x128xi32>
      %61 = arith.cmpi slt, %57, %60 : vector<1x128xi32>
      %62 = arith.andi %59, %61 : vector<1x128xi1>
      %cst_35 = arith.constant 0xFF800000 : f32
      %63 = vector.broadcast %cst_35 : f32 to vector<1x128xf32>
      %64 = arith.select %62, %56, %63 : vector<1x128xi1>, vector<1x128xf32>
      %cst_36 = arith.constant dense<0xFF800000> : vector<1xf32>
      %65 = vector.multi_reduction <maximumf>, %64, %cst_36 [1] : vector<1x128xf32> to vector<1xf32>
      %66 = vector.shape_cast %65 : vector<1xf32> to vector<1x1xf32>
      %67 = vector.broadcast %66 : vector<1x1xf32> to vector<1x128xf32>
      %68 = arith.subf %56, %67 : vector<1x128xf32>
      %69 = math.exp %68 : vector<1x128xf32>
      %cst_37 = arith.constant 0.000000e+00 : f32
      %70 = vector.broadcast %cst_37 : f32 to vector<1x128xf32>
      %71 = arith.select %62, %69, %70 : vector<1x128xi1>, vector<1x128xf32>
      %cst_38 = arith.constant dense<0.000000e+00> : vector<1xf32>
      %72 = vector.multi_reduction <add>, %71, %cst_38 [1] : vector<1x128xf32> to vector<1xf32>
      %73 = vector.shape_cast %72 : vector<1xf32> to vector<1x1xf32>
      %74 = vector.broadcast %73 : vector<1x1xf32> to vector<1x128xf32>
      %75 = arith.divf %71, %74 : vector<1x128xf32>
      %c8_i32_39 = arith.constant 8 : i32
      %76 = vector.broadcast %c8_i32_39 : i32 to vector<1x128xi32>
      %77 = arith.cmpi slt, %57, %76 : vector<1x128xi32>
      %cst_40 = arith.constant 0.000000e+00 : f32
      %78 = vector.broadcast %cst_40 : f32 to vector<1x128xf32>
      %79 = arith.select %77, %56, %78 : vector<1x128xi1>, vector<1x128xf32>
      %80 = arith.select %62, %75, %79 : vector<1x128xi1>, vector<1x128xf32>
      %81 = vector.shape_cast %80 : vector<1x128xf32> to vector<1x1x128xf32>
      %c0_41 = arith.constant 0 : index
      %c0_42 = arith.constant 0 : index
      %c0_43 = arith.constant 0 : index
      %82 = vector.load %arg6[%c0_41, %c0_42, %c0_43] : memref<1x1x128xf32, #tpu.memory_space<vmem>>, vector<1x1x128xf32>
      tpu.vector_store %arg6[%c0_41, %c0_42, %c0_43], %81 {strides = array<i32>} : memref<1x1x128xf32, #tpu.memory_space<vmem>>, vector<1x1x128xf32>,
    } else {
    }
    return
  }
  func.func @transform_0(%arg0: i32, %arg1: i32) -> (i32, i32, i32) {
    %c0_i32 = arith.constant 0 : i32
    %c0_i32_0 = arith.constant 0 : i32
    return %arg0, %arg1, %c0_i32 : i32, i32, i32
  }
  func.func @transform_1(%arg0: i32, %arg1: i32) -> (i32, i32) {
    %c0_i32 = arith.constant 0 : i32
    %c0_i32_0 = arith.constant 0 : i32
    %c0_i32_1 = arith.constant 0 : i32
    return %c0_i32, %c0_i32_0 : i32, i32
  }
  func.func @transform_2(%arg0: i32, %arg1: i32) -> (i32, i32) {
    %c0_i32 = arith.constant 0 : i32
    %c0_i32_0 = arith.constant 0 : i32
    %c0_i32_1 = arith.constant 0 : i32
    return %c0_i32, %c0_i32_0 : i32, i32
  }
  func.func @transform_3(%arg0: i32, %arg1: i32) -> (i32, i32) {
    %c0_i32 = arith.constant 0 : i32
    %c0_i32_0 = arith.constant 0 : i32
    %c0_i32_1 = arith.constant 0 : i32
    return %c0_i32, %c0_i32_0 : i32, i32
  }
  func.func @transform_4(%arg0: i32, %arg1: i32) -> (i32, i32, i32) {
    %c0_i32 = arith.constant 0 : i32
    %c0_i32_0 = arith.constant 0 : i32
    %c0_i32_1 = arith.constant 0 : i32
    return %arg0, %c0_i32, %c0_i32_0 : i32, i32, i32
  }
}

</mosaic_0001>

<llo_original>
// kernel: tpu_custom_call.1
$region0: #{tpu_custom_call.1}
  #allocation0 [shape = 'u32[]', space=smem, size = 0x4, offset = 0x4, fixed_abs, tag = 'smem constant byte address 0x4 - core index']
  #allocation1 [shape = 'u32[144,128]{1,0:T(1,128)}', space=vmem, size = 0x12000, scoped, tag = 'internal scratch']
  #allocation2 [shape = 'f32[1,128]{1,0:T(1,128)}', space=vmem, size = 0x200, scoped, tag = 'scratch operand']
  #allocation3 [shape = 'f32[1,128]{1,0:T(1,128)}', space=vmem, size = 0x200, scoped, tag = 'scratch operand']
  #allocation4 [shape = 'f32[1,128]{1,0:T(1,128)}', space=vmem, size = 0x200, scoped, tag = 'scratch operand']
  %s0 = inlined_call_operand.hbm [shape: f32[2,16,32], index: 0, kind: input, shape index: {}]
  %s1 = inlined_call_operand.hbm [shape: f32[32,32], index: 1, kind: input, shape index: {}]
  %s2 = inlined_call_operand.vmem [shape: f32[1,32], index: 2, kind: input, shape index: {}]
  %s3 = inlined_call_operand.hbm [shape: f32[32,128], index: 3, kind: input, shape index: {}]
  %s4 = inlined_call_operand.hbm [shape: f32[2,1,128], index: 4, kind: output, shape index: {}]
  %s5 = sld [smem:[#allocation0]]
  $region69: #{tpu_custom_call.1} parent=0
    _
  %s7 = ssub.s32 1, %s5
  %s8 = scalar_select 0, %s7, %s5
  $region1: #{tpu_custom_call.1} parent=0
    #allocation5 [shape = 'u8[16384]{0}', space=vmem, size = 0x4000, scoped, tag = 'input window, operand 0']
    #allocation6 [shape = 's32[2]{0}', space=sflag, size = 0x8, scoped, tag = 'scoped memory for tpu_custom_call.1']
    #allocation7 [shape = 's32[2]{0}', space=sflag, size = 0x8, scoped, tag = 'scoped memory for tpu_custom_call.1']
    #allocation8 [shape = 'u8[16384]{0}', space=vmem, size = 0x4000, scoped, tag = 'input window, operand 1, single buffered']
    #allocation9 [shape = 's32[1]{0}', space=sflag, size = 0x4, scoped, tag = 'scoped memory for tpu_custom_call.1']
    #allocation10 [shape = 'u8[16384]{0}', space=vmem, size = 0x4000, scoped, tag = 'input window, operand 3, single buffered']
    #allocation11 [shape = 'u8[1024]{0}', space=vmem, size = 0x400, scoped, tag = 'output window, operand 0']
    %9 = vsyncpa [#allocation6], 0
    %s10 = scalar_lea.sflag [#allocation6], 1
    %11 = vsyncpa %s10, 0
    %12 = vsyncpa [#allocation9], 0
    %13 = vsyncpa [#allocation7], 0
    %s14 = scalar_lea.sflag [#allocation7], 1
    %15 = vsyncpa %s14, 0
    loop: start=0, step=1, limit=4
    $region2: #{tpu_custom_call.1} parent=1 // loop_pre_header
      _
    $region3: #{tpu_custom_call.1} parent=1 // loop_header
      %s17 = sphi 0, %s21
      %p18 = scmp.ge.s32.totalorder %s17, 4
      %s24 = sphi 0, %s36
      %s25 = sphi 0, %s32
      %s26 = sphi 0, %s24
      %s27 = sphi 0, %s25
      %s28 = sphi 0, %s26
      %s29 = sphi 0, %s27
      %s41 = sphi 0, %s43
      %s44 = sphi 0, %s41
      %s45 = sphi 0, %s44
      %s61 = sphi 0, %s45
      %s65 = sphi 0, %s65
      %s67 = sphi 0, %s65
      %s68 = sphi 0, %s67
      %s82 = sphi 0, %s68
      %s86 = sphi 0, %s86
      %s88 = sphi 0, %s86
      %s89 = sphi 0, %s88
      %s103 = sphi 0, %s89
      %s107 = sphi 0, %s107
      %s109 = sphi 0, %s107
      %s110 = sphi 0, %s109
      %s124 = sphi 0, %s110
      %s130 = sphi 0, %s132
      %s133 = sphi 0, %s130
      %s134 = sphi 0, %s133
      %s150 = sphi 0, %s134
    $region4: #{tpu_custom_call.1} parent=1 // loop_header_branch
      %20 = sbr.rel (%p18) target = $region8
    $region5: #{tpu_custom_call.1} parent=1 // loop_body
      %s22 = ssub.s32 %s17, 1
      %s23 = ssub.s32 %s17, 2
      %s30 = sadd.s32 1, %s25
      %p31 = scmp.ge.s32.totalorder %s30, 1
      %s32 = scalar_select %p31, 0, %s30
      %s33 = sadd.s32 1, %s24
      %s34 = scalar_select %p31, %s33, %s24
      %p35 = scmp.ge.s32.totalorder %s34, 2
      %s36 = scalar_select %p35, 0, %s34
      %s37 = ssub.s32 %s24, %s36
      %s38 = ssub.s32 %s25, %s32
      %s39 = sor.u32 %s37, %s38
      %p40 = scmp.eq.s32.totalorder %s39, 0
      %s42 = sadd.s32 %s41, 1
      %s43 = scalar_select %p40, %s41, %s42
      %p46 = pneg %p40
      %p47 = scmp.eq.s32.totalorder %s17, 1
      %p48 = por %p46, %p47
      %p49 = scmp.ne.s32.totalorder %s41, %s44
      %p50 = scmp.eq.s32.totalorder %s17, 0
      %p51 = por %p49, %p50
      %p52 = scmp.ne.s32.totalorder %s41, %s44
      %p53 = scmp.eq.s32.totalorder %s22, 1
      %p54 = por %p52, %p53
      %p55 = scmp.ne.s32.totalorder %s44, %s45
      %p56 = scmp.eq.s32.totalorder %s22, 0
      %p57 = por %p55, %p56
      %p58 = scmp.ne.s32.totalorder %s44, %s45
      %p59 = scmp.eq.s32.totalorder %s23, 1
      %p60 = por %p58, %p59
      %p62 = scmp.ne.s32.totalorder %s45, %s61
      %p63 = scmp.eq.s32.totalorder %s23, 0
      %p64 = por %p62, %p63
      %s66 = sadd.s32 %s65, 1
      %p69 = scmp.eq.s32.totalorder %s17, 1
      %p70 = scmp.ne.s32.totalorder %s65, %s67
      %p71 = scmp.eq.s32.totalorder %s17, 0
      %p72 = por %p70, %p71
      %p73 = scmp.ne.s32.totalorder %s65, %s67
      %p74 = scmp.eq.s32.totalorder %s22, 1
      %p75 = por %p73, %p74
      %p76 = scmp.ne.s32.totalorder %s67, %s68
      %p77 = scmp.eq.s32.totalorder %s22, 0
      %p78 = por %p76, %p77
      %p79 = scmp.ne.s32.totalorder %s67, %s68
      %p80 = scmp.eq.s32.totalorder %s23, 1
      %p81 = por %p79, %p80
      %p83 = scmp.ne.s32.totalorder %s68, %s82
      %p84 = scmp.eq.s32.totalorder %s23, 0
      %p85 = por %p83, %p84
      %s87 = sadd.s32 %s86, 1
      %p90 = scmp.eq.s32.totalorder %s17, 1
      %p91 = scmp.ne.s32.totalorder %s86, %s88
      %p92 = scmp.eq.s32.totalorder %s17, 0
      %p93 = por %p91, %p92
      %p94 = scmp.ne.s32.totalorder %s86, %s88
      %p95 = scmp.eq.s32.totalorder %s22, 1
      %p96 = por %p94, %p95
      %p97 = scmp.ne.s32.totalorder %s88, %s89
      %p98 = scmp.eq.s32.totalorder %s22, 0
      %p99 = por %p97, %p98
      %p100 = scmp.ne.s32.totalorder %s88, %s89
      %p101 = scmp.eq.s32.totalorder %s23, 1
      %p102 = por %p100, %p101
      %p104 = scmp.ne.s32.totalorder %s89, %s103
      %p105 = scmp.eq.s32.totalorder %s23, 0
      %p106 = por %p104, %p105
      %s108 = sadd.s32 %s107, 1
      %p111 = scmp.eq.s32.totalorder %s17, 1
      %p112 = scmp.ne.s32.totalorder %s107, %s109
      %p113 = scmp.eq.s32.totalorder %s17, 0
      %p114 = por %p112, %p113
      %p115 = scmp.ne.s32.totalorder %s107, %s109
      %p116 = scmp.eq.s32.totalorder %s22, 1
      %p117 = por %p115, %p116
      %p118 = scmp.ne.s32.totalorder %s109, %s110
      %p119 = scmp.eq.s32.totalorder %s22, 0
      %p120 = por %p118, %p119
      %p121 = scmp.ne.s32.totalorder %s109, %s110
      %p122 = scmp.eq.s32.totalorder %s23, 1
      %p123 = por %p121, %p122
      %p125 = scmp.ne.s32.totalorder %s110, %s124
      %p126 = scmp.eq.s32.totalorder %s23, 0
      %p127 = por %p125, %p126
      %s128 = ssub.s32 %s24, %s36
      %p129 = scmp.eq.s32.totalorder %s128, 0
      %s131 = sadd.s32 %s130, 1
      %s132 = scalar_select %p129, %s130, %s131
      %p135 = pneg %p129
      %p136 = scmp.eq.s32.totalorder %s17, 1
      %p137 = por %p135, %p136
      %p138 = scmp.ne.s32.totalorder %s130, %s133
      %p139 = scmp.eq.s32.totalorder %s17, 0
      %p140 = por %p138, %p139
      %p141 = scmp.ne.s32.totalorder %s130, %s133
      %p142 = scmp.eq.s32.totalorder %s22, 1
      %p143 = por %p141, %p142
      %p144 = scmp.ne.s32.totalorder %s133, %s134
      %p145 = scmp.eq.s32.totalorder %s22, 0
      %p146 = por %p144, %p145
      %p147 = scmp.ne.s32.totalorder %s133, %s134
      %p148 = scmp.eq.s32.totalorder %s23, 1
      %p149 = por %p147, %p148
      %p151 = scmp.ne.s32.totalorder %s134, %s150
      %p152 = scmp.eq.s32.totalorder %s23, 0
      %p153 = por %p151, %p152
      %p154 = scmp.le.s32.totalorder 1, %s17
      %p155 = scmp.lt.s32.totalorder %s17, 3
      %p156 = pnand %p154, %p155
      %p157 = pneg %p156
      // Predicated region
      $region9: #{tpu_custom_call.1} parent=5 // pred_check
        _
      $region10: #{tpu_custom_call.1} parent=5 // pred_check_branch
        %159 = sbr.rel (%p156) target = $region12
      $region11: #{tpu_custom_call.1} parent=5 // pred_region
        %s160 = ssub.s32 %s17, 1
        // Predicated region
        $region13: #{tpu_custom_call.1} parent=11 // pred_check
          %p161 = pneg %p78
        $region14: #{tpu_custom_call.1} parent=11 // pred_check_branch
          %163 = sbr.rel (%p161) target = $region16
        $region15: #{tpu_custom_call.1} parent=11 // pred_region
          %s165 = ssub.s32 512, 512
          %166 = vsyncadd [#allocation9], %s165
          %s167 = sshll.u32 [#allocation8], 4
          %s168 = int_to_ptr.vmem [resolvable:$true] %s167
          %173 = dma.hbm_to_vmem [thread:$0]  %s1, 512, %s168, [#allocation9], 128, 128, 8
        $region16: #{tpu_custom_call.1} parent=11 // pred_fallthru
          _
        // Predicated region
        $region17: #{tpu_custom_call.1} parent=11 // pred_check
          %p174 = pneg %p99
        $region18: #{tpu_custom_call.1} parent=11 // pred_check_branch
          %176 = sbr.rel (%p174) target = $region20
        $region19: #{tpu_custom_call.1} parent=11 // pred_region
          _
        $region20: #{tpu_custom_call.1} parent=11 // pred_fallthru
          _
        // Predicated region
        $region21: #{tpu_custom_call.1} parent=11 // pred_check
          %p177 = pneg %p120
        $region22: #{tpu_custom_call.1} parent=11 // pred_check_branch
          %179 = sbr.rel (%p177) target = $region24
        $region23: #{tpu_custom_call.1} parent=11 // pred_region
          %s181 = ssub.s32 512, 512
          %182 = vsyncadd [#allocation9], %s181
          %s183 = sshll.u32 [#allocation10], 4
          %s184 = int_to_ptr.vmem [resolvable:$true] %s183
          %189 = dma.hbm_to_vmem [thread:$0]  %s3, 512, %s184, [#allocation9], 128, 128, 8
        $region24: #{tpu_custom_call.1} parent=11 // pred_fallthru
          _
      $region12: #{tpu_custom_call.1} parent=5 // pred_fallthru
        _
      %p190 = scmp.lt.s32.totalorder %s17, 2
      // Predicated region
      $region25: #{tpu_custom_call.1} parent=5 // pred_check
        %p191 = pneg %p190
      $region26: #{tpu_custom_call.1} parent=5 // pred_check_branch
        %193 = sbr.rel (%p191) target = $region28
      $region27: #{tpu_custom_call.1} parent=5 // pred_region
        // Predicated region
        $region29: #{tpu_custom_call.1} parent=27 // pred_check
          %p194 = pneg %p51
        $region30: #{tpu_custom_call.1} parent=27 // pred_check_branch
          %196 = sbr.rel (%p194) target = $region32
        $region31: #{tpu_custom_call.1} parent=27 // pred_region
          %s197 = sand.u32 %s41, 1
          %s198 = scalar_lea.sflag [#allocation6], %s197
          %s199 = sand.u32 %s41, 1
          %s200 = smul.addr %s199, 16
          %s201 = scalar_lea.vmem [#allocation5], %s200
          %s202 = smul.u32 2, %s25
          %s204 = ssub.s32 256, 256
          %205 = vsyncadd %s198, %s204
          %s206 = smul.addr %s24, 2
          %s207 = sadd.s32 %s202, %s206
          %s208 = smul.addr %s207, 128
          %s209 = scalar_lea.hbm %s0, %s208
          %s210 = sshll.u32 %s201, 4
          %s211 = int_to_ptr.vmem [resolvable:$true] %s210
          %216 = dma.hbm_to_vmem [thread:$0]  %s209, 256, %s211, %s198, 128, 128, 8
        $region32: #{tpu_custom_call.1} parent=27 // pred_fallthru
          _
      $region28: #{tpu_custom_call.1} parent=5 // pred_fallthru
        _
      %p217 = scmp.le.s32.totalorder 1, %s17
      %p218 = scmp.lt.s32.totalorder %s17, 3
      %p219 = pnand %p217, %p218
      %p220 = pneg %p219
      // Predicated region
      $region33: #{tpu_custom_call.1} parent=5 // pred_check
        _
      $region34: #{tpu_custom_call.1} parent=5 // pred_check_branch
        %222 = sbr.rel (%p219) target = $region36
      $region35: #{tpu_custom_call.1} parent=5 // pred_region
        %s223 = ssub.s32 %s17, 1
        %s224 = sand.u32 %s44, 1
        %s225 = scalar_lea.sflag [#allocation6], %s224
        %s226 = sand.u32 %s44, 1
        %s227 = smul.addr %s226, 16
        %s228 = scalar_lea.vmem [#allocation5], %s227
        // Predicated region
        $region37: #{tpu_custom_call.1} parent=35 // pred_check
          %p229 = pneg %p57
        $region38: #{tpu_custom_call.1} parent=35 // pred_check_branch
          %231 = sbr.rel (%p229) target = $region40
        $region39: #{tpu_custom_call.1} parent=35 // pred_region
          %232 = dma.done %s225, 256
        $region40: #{tpu_custom_call.1} parent=35 // pred_fallthru
          _
        // Predicated region
        $region41: #{tpu_custom_call.1} parent=35 // pred_check
          %p233 = pneg %p78
        $region42: #{tpu_custom_call.1} parent=35 // pred_check_branch
          %235 = sbr.rel (%p233) target = $region44
        $region43: #{tpu_custom_call.1} parent=35 // pred_region
          %236 = dma.done [#allocation9], 512
        $region44: #{tpu_custom_call.1} parent=35 // pred_fallthru
          _
        // Predicated region
        $region45: #{tpu_custom_call.1} parent=35 // pred_check
          %p237 = pneg %p120
        $region46: #{tpu_custom_call.1} parent=35 // pred_check_branch
          %239 = sbr.rel (%p237) target = $region48
        $region47: #{tpu_custom_call.1} parent=35 // pred_region
          %240 = dma.done [#allocation9], 512
        $region48: #{tpu_custom_call.1} parent=35 // pred_fallthru
          _
        %s241 = sand.u32 %s44, 1
        %s242 = scalar_lea.sflag [#allocation6], %s241
        %s243 = sand.u32 %s44, 1
        %s244 = smul.addr %s243, 16
        %s245 = scalar_lea.vmem [#allocation5], %s244
        %p246 = pneg %p57
        %p247 = pneg %p54
        %p248 = pneg %p78
        %p249 = pneg %p75
        %p250 = pneg %p99
        %p251 = pneg %p96
        %p252 = pneg %p120
        %p253 = pneg %p117
        %p254 = pneg %p146
        %p255 = pneg %p143
        %s256 = sand.u32 %s133, 1
        %s257 = scalar_lea.sflag [#allocation7], %s256
        %s258 = sand.u32 %s133, 1
        %s259 = scalar_lea.vmem [#allocation11], %s258
        %s260 = smul.u32 2, %s27
        %p261 = scmp.eq.s32.totalorder %s27, 0
        // Predicated region
        $region49: #{tpu_custom_call.1} parent=35 // pred_check
          %p262 = pneg %p261
        $region50: #{tpu_custom_call.1} parent=35 // pred_check_branch
          %264 = sbr.rel (%p262) target = $region52
        $region51: #{tpu_custom_call.1} parent=35 // pred_region
          %265 = vst [vmem:[#allocation2] sm:$0x1] -inf
          %266 = vst [vmem:[#allocation3] sm:$0x1] 0.0
          %267 = vst [vmem:[#allocation4] sm:$0x1] 0.0
        $region52: #{tpu_custom_call.1} parent=35 // pred_fallthru
          _
        %v268 = vld [vmem:[%s228] sm:$0xff]
        %v269 = vld [vmem:[%s228 + $0x8] sm:$0xff]
        %v270 = vmul.f32 %v268, %v268
        %v271 = vmul.f32 %v269, %v269
        %vm272 = vcmask 261120
        %v273 = vsel %vm272, %v270, 0.0
        %274 = vadd.xlane.f32.xlu0 %v273
        %v275 = vpop.xlane.xlu0 %274
        %v276 = vsel %vm272, %v271, 0.0
        %277 = vadd.xlane.f32.xlu0 %v276
        %v278 = vpop.xlane.xlu0 %277
        %v279 = vmax.f32 %v275, 1e-24
        %v280 = vmax.f32 %v278, 1e-24
        %v281 = vrsqrt.pop %v279
        %v282 = vrsqrt.pop %v280
        %v283 = vmul.f32 %v268, %v281
        %v284 = vmul.f32 %v269, %v282
        %v285 = vld [vmem:[#allocation8] sm:$0xff]
        %v286 = vld [vmem:[#allocation8 + $0x8] sm:$0xff]
        %v287 = vld [vmem:[#allocation8 + $0x10] sm:$0xff]
        %v288 = vld [vmem:[#allocation8 + $0x18] sm:$0xff]
        %v289 = vld [vmem:[%s2] sm:$0x1]
        %v291 = vlaneseq
        %v292 = vshrl.u32 %v291, 7
        %v293 = vsub.s32 0, %v292
        %v294 = vrot.slane %v289, %v293
        %v297 = vsel %vm272, %v283, 0
        %v300 = vsel %vm272, %v284, 0
        %302 = vmatprep.subr.mxu0 0.0
        %303 = vmatpush1.msra.mxu0 %v285
        %304 = vmatprep.subr.mxu0 0.0
        %305 = vmatpush1.msra.mxu0 %v286
        %306 = vmatprep.subr.mxu0 0.0
        %307 = vmatpush1.msra.mxu0 %v287
        %308 = vmatprep.subr.mxu0 0.0
        %309 = vmatpush1.msra.mxu0 %v288
        %310 = vmatprep.subr.mxu0 0.0
        %311 = vmatpush1.msra.mxu0 0.0
        %312 = vmatprep.subr.mxu0 0.0
        %313 = vmatpush1.msra.mxu0 0.0
        %314 = vmatprep.subr.mxu0 0.0
        %315 = vmatpush1.msra.mxu0 0.0
        %316 = vmatprep.subr.mxu0 0.0
        %317 = vmatpush1.msra.mxu0 0.0
        %318 = vmatprep.subr.mxu0 0.0
        %319 = vmatpush1.msra.mxu0 0.0
        %320 = vmatprep.subr.mxu0 0.0
        %321 = vmatpush1.msra.mxu0 0.0
        %322 = vmatprep.subr.mxu0 0.0
        %323 = vmatpush1.msra.mxu0 0.0
        %324 = vmatprep.subr.mxu0 0.0
        %325 = vmatpush1.msra.mxu0 0.0
        %326 = vmatprep.subr.mxu0 0.0
        %327 = vmatpush1.msra.mxu0 0.0
        %328 = vmatprep.subr.mxu0 0.0
        %329 = vmatpush1.msra.mxu0 0.0
        %330 = vmatprep.subr.mxu0 0.0
        %331 = vmatpush1.msra.mxu0 0.0
        %332 = vmatprep.subr.mxu0 0.0
        %333 = vmatpush1.msra.mxu0 0.0
        %334 = vmatprep.subr.mxu0 0.0
        %335 = vmatpush1.msra.mxu0 0.0
        %336 = vmatprep.subr.mxu0 0.0
        %337 = vmatpush1.msra.mxu0 0.0
        %338 = vmatprep.subr.mxu0 0.0
        %339 = vmatpush1.msra.mxu0 0.0
        %340 = vmatprep.subr.mxu0 0.0
        %341 = vmatpush1.msra.mxu0 0.0
        %342 = vmatprep.subr.mxu0 0.0
        %343 = vmatpush1.msra.mxu0 0.0
        %344 = vmatprep.subr.mxu0 0.0
        %345 = vmatpush1.msra.mxu0 0.0
        %346 = vmatprep.subr.mxu0 0.0
        %347 = vmatpush1.msra.mxu0 0.0
        %348 = vmatprep.subr.mxu0 0.0
        %349 = vmatpush1.msra.mxu0 0.0
        %350 = vmatprep.subr.mxu0 0.0
        %351 = vmatpush1.msra.mxu0 0.0
        %352 = vmatprep.subr.mxu0 0.0
        %353 = vmatpush1.msra.mxu0 0.0
        %354 = vmatprep.subr.mxu0 0.0
        %355 = vmatpush1.msra.mxu0 0.0
        %356 = vmatprep.subr.mxu0 0.0
        %357 = vmatpush1.msra.mxu0 0.0
        %358 = vmatprep.subr.mxu0 0.0
        %359 = vmatpush1.msra.mxu0 0.0
        %360 = vmatprep.subr.mxu0 0.0
        %361 = vmatpush1.msra.mxu0 0.0
        %362 = vmatprep.subr.mxu0 0.0
        %363 = vmatpush1.msra.mxu0 0.0
        %364 = vmatprep.subr.mxu0 0.0
        %365 = vmatpush1.msra.mxu0 0.0
        %366 = vmatprep.mubr.f32.mxu0 0.0
        %367 = vmatmul.mubr.f32.gmra.mrb[0].mxu0 %v297
        %v368 = vpop.f32.mrb[0].mxu0
        %v369 = vadd.f32 %v294, %v368
        %v370 = vpop.f32.mrb[0].mxu0
        %371 = vmatprep.mubr.f32.mxu0 0.0
        %372 = vmatmul.mubr.f32.gmra.mrb[0].mxu0 %v300
        %v373 = vpop.f32.mrb[0].mxu0
        %v374 = vadd.f32 %v294, %v373
        %v375 = vpop.f32.mrb[0].mxu0
        %376 = vdwg.mxu0
        %v377 = vmul.f32 %v369, %v369
        %v378 = vmul.f32 %v374, %v374
        %v379 = vsel %vm272, %v377, 0.0
        %380 = vadd.xlane.f32.xlu0 %v379
        %v381 = vpop.xlane.xlu0 %380
        %v382 = vsel %vm272, %v378, 0.0
        %383 = vadd.xlane.f32.xlu0 %v382
        %v384 = vpop.xlane.xlu0 %383
        %v385 = vmax.f32 %v381, 1e-24
        %v386 = vmax.f32 %v384, 1e-24
        %v387 = vrsqrt.pop %v385
        %v388 = vrsqrt.pop %v386
        %v389 = vmul.f32 %v369, %v387
        %v390 = vmul.f32 %v374, %v388
        %v391 = vld [vmem:[#allocation10] sm:$0xff]
        %v392 = vld [vmem:[#allocation10 + $0x8] sm:$0xff]
        %v393 = vld [vmem:[#allocation10 + $0x10] sm:$0xff]
        %v394 = vld [vmem:[#allocation10 + $0x18] sm:$0xff]
        %v396 = vsel %vm272, %v389, 0
        %v399 = vsel %vm272, %v390, 0
        %401 = vmatprep.subr.mxu0 0.0
        %402 = vmatpush1.msra.mxu0 %v391
        %403 = vmatprep.subr.mxu0 0.0
        %404 = vmatpush1.msra.mxu0 %v392
        %405 = vmatprep.subr.mxu0 0.0
        %406 = vmatpush1.msra.mxu0 %v393
        %407 = vmatprep.subr.mxu0 0.0
        %408 = vmatpush1.msra.mxu0 %v394
        %409 = vmatprep.subr.mxu0 0.0
        %410 = vmatpush1.msra.mxu0 0.0
        %411 = vmatprep.subr.mxu0 0.0
        %412 = vmatpush1.msra.mxu0 0.0
        %413 = vmatprep.subr.mxu0 0.0
        %414 = vmatpush1.msra.mxu0 0.0
        %415 = vmatprep.subr.mxu0 0.0
        %416 = vmatpush1.msra.mxu0 0.0
        %417 = vmatprep.subr.mxu0 0.0
        %418 = vmatpush1.msra.mxu0 0.0
        %419 = vmatprep.subr.mxu0 0.0
        %420 = vmatpush1.msra.mxu0 0.0
        %421 = vmatprep.subr.mxu0 0.0
        %422 = vmatpush1.msra.mxu0 0.0
        %423 = vmatprep.subr.mxu0 0.0
        %424 = vmatpush1.msra.mxu0 0.0
        %425 = vmatprep.subr.mxu0 0.0
        %426 = vmatpush1.msra.mxu0 0.0
        %427 = vmatprep.subr.mxu0 0.0
        %428 = vmatpush1.msra.mxu0 0.0
        %429 = vmatprep.subr.mxu0 0.0
        %430 = vmatpush1.msra.mxu0 0.0
        %431 = vmatprep.subr.mxu0 0.0
        %432 = vmatpush1.msra.mxu0 0.0
        %433 = vmatprep.subr.mxu0 0.0
        %434 = vmatpush1.msra.mxu0 0.0
        %435 = vmatprep.subr.mxu0 0.0
        %436 = vmatpush1.msra.mxu0 0.0
        %437 = vmatprep.subr.mxu0 0.0
        %438 = vmatpush1.msra.mxu0 0.0
        %439 = vmatprep.subr.mxu0 0.0
        %440 = vmatpush1.msra.mxu0 0.0
        %441 = vmatprep.subr.mxu0 0.0
        %442 = vmatpush1.msra.mxu0 0.0
        %443 = vmatprep.subr.mxu0 0.0
        %444 = vmatpush1.msra.mxu0 0.0
        %445 = vmatprep.subr.mxu0 0.0
        %446 = vmatpush1.msra.mxu0 0.0
        %447 = vmatprep.subr.mxu0 0.0
        %448 = vmatpush1.msra.mxu0 0.0
        %449 = vmatprep.subr.mxu0 0.0
        %450 = vmatpush1.msra.mxu0 0.0
        %451 = vmatprep.subr.mxu0 0.0
        %452 = vmatpush1.msra.mxu0 0.0
        %453 = vmatprep.subr.mxu0 0.0
        %454 = vmatpush1.msra.mxu0 0.0
        %455 = vmatprep.subr.mxu0 0.0
        %456 = vmatpush1.msra.mxu0 0.0
        %457 = vmatprep.subr.mxu0 0.0
        %458 = vmatpush1.msra.mxu0 0.0
        %459 = vmatprep.subr.mxu0 0.0
        %460 = vmatpush1.msra.mxu0 0.0
        %461 = vmatprep.subr.mxu0 0.0
        %462 = vmatpush1.msra.mxu0 0.0
        %463 = vmatprep.subr.mxu0 0.0
        %464 = vmatpush1.msra.mxu0 0.0
        %465 = vmatprep.mubr.f32.mxu0 0.0
        %466 = vmatmul.mubr.f32.gmra.mrb[0].mxu0 %v396
        %v467 = vpop.f32.mrb[0].mxu0
        %v468 = vadd.f32 0.0, %v467
        %v469 = vpop.f32.mrb[0].mxu0
        %470 = vmatprep.mubr.f32.mxu0 0.0
        %471 = vmatmul.mubr.f32.gmra.mrb[0].mxu0 %v399
        %v472 = vpop.f32.mrb[0].mxu0
        %v473 = vadd.f32 0.0, %v472
        %v474 = vpop.f32.mrb[0].mxu0
        %475 = vdwg.mxu0
        %v476 = vld [vmem:[#allocation2] sm:$0x1]
        %v477 = vmax.f32 %v468, %v473
        %v478 = vrot.slane %v477, 4
        %v479 = vmax.f32 %v477, %v478
        %v480 = vrot.slane %v479, 2
        %v481 = vmax.f32 %v479, %v480
        %v482 = vrot.slane %v481, 1
        %v483 = vmax.f32 %v481, %v482
        %v484 = vmax.f32 %v476, %v483
        %v485 = vsub.f32 %v476, %v484
        %v486 = vmul.f32 %v485, 1.442695
        %v487 = vpow.pop %v486
        %v489 = vlaneseq
        %v490 = vshrl.u32 %v489, 7
        %v491 = vsub.s32 0, %v490
        %v492 = vrot.slane %v484, %v491
        %v494 = vsub.f32 %v468, %v492
        %v495 = vsub.f32 %v473, %v492
        %v496 = vmul.f32 %v494, 1.442695
        %v497 = vpow.pop %v496
        %v498 = vmul.f32 %v495, 1.442695
        %v499 = vpow.pop %v498
        %v500 = vld [vmem:[#allocation3] sm:$0x1]
        %v501 = vmul.f32 %v487, %v500
        %v502 = vadd.f32 %v497, %v499
        %v503 = vrot.slane %v502, 4
        %v504 = vadd.f32 %v502, %v503
        %v505 = vrot.slane %v504, 2
        %v506 = vadd.f32 %v504, %v505
        %v507 = vrot.slane %v506, 1
        %v508 = vadd.f32 %v506, %v507
        %v509 = vadd.f32 %v501, %v508
        %510 = vst [vmem:[#allocation3] sm:$0x1] %v509
        %v511 = vld [vmem:[#allocation4] sm:$0x1]
        %v512 = vmul.f32 %v487, %v511
        %v513 = vmul.f32 %v497, %v468
        %v514 = vmul.f32 %v499, %v473
        %v515 = vadd.f32 %v513, %v514
        %v516 = vrot.slane %v515, 4
        %v517 = vadd.f32 %v515, %v516
        %v518 = vrot.slane %v517, 2
        %v519 = vadd.f32 %v517, %v518
        %v520 = vrot.slane %v519, 1
        %v521 = vadd.f32 %v519, %v520
        %v522 = vadd.f32 %v512, %v521
        %523 = vst [vmem:[#allocation4] sm:$0x1] %v522
        %524 = vst [vmem:[#allocation2] sm:$0x1] %v484
        // Predicated region
        $region53: #{tpu_custom_call.1} parent=35 // pred_check
          %p525 = pneg %p261
        $region54: #{tpu_custom_call.1} parent=35 // pred_check_branch
          %527 = sbr.rel (%p525) target = $region56
        $region55: #{tpu_custom_call.1} parent=35 // pred_region
          %v528 = vld [vmem:[#allocation4] sm:$0x1]
          %v529 = vld [vmem:[#allocation3] sm:$0x1]
          %v530 = vrcp.pop %v529
          %v531 = vmul.f32 %v528, %v530
          %v532 = vlaneseq
          %v533 = vand.u32 %v532, 127
          %vm534 = vcmp.ge.s32.totalorder %v533, 8
          %vm535 = vcmp.lt.s32.totalorder %v533, 12
          %vm536 = vmand %vm534, %vm535
          %v537 = vsel %vm536, %v531, -inf
          %vm538 = vcmask 1040384
          %v539 = vsel %vm538, %v537, -inf
          %540 = vmax.xlane.f32.xlu0 %v539
          %v541 = vpop.xlane.xlu0 %540
          %v542 = vsub.f32 %v531, %v541
          %v543 = vmul.f32 %v542, 1.442695
          %v544 = vpow.pop %v543
          %v545 = vsel %vm536, %v544, 0.0
          %v546 = vsel %vm538, %v545, 0.0
          %547 = vadd.xlane.f32.xlu0 %v546
          %v548 = vpop.xlane.xlu0 %547
          %v549 = vrcp.pop %v548
          %v550 = vmul.f32 %v545, %v549
          %vm551 = vcmp.lt.s32.totalorder %v533, 8
          %v552 = vsel %vm551, %v531, 0.0
          %v553 = vsel %vm536, %v550, %v552
          %554 = vst [vmem:[%s259] sm:$0x1] %v553
        $region56: #{tpu_custom_call.1} parent=35 // pred_fallthru
          _
        %s555 = sand.u32 %s133, 1
        %s556 = scalar_lea.sflag [#allocation7], %s555
        %s557 = sand.u32 %s133, 1
        %s558 = scalar_lea.vmem [#allocation11], %s557
        // Predicated region
        $region57: #{tpu_custom_call.1} parent=35 // pred_check
          %p559 = pneg %p143
        $region58: #{tpu_custom_call.1} parent=35 // pred_check_branch
          %561 = sbr.rel (%p559) target = $region60
        $region59: #{tpu_custom_call.1} parent=35 // pred_region
          %s563 = ssub.s32 16, 16
          %564 = vsyncadd %s556, %s563
          %s565 = smul.addr %s26, 16
          %s566 = scalar_lea.hbm %s4, %s565
          %s568 = sshll.u32 %s558, 4
          %s569 = int_to_ptr.vmem [resolvable:$true] %s568
          %571 = dma.vmem_to_hbm [thread:$0]  %s569, 16, %s566, %s556
        $region60: #{tpu_custom_call.1} parent=35 // pred_fallthru
          _
      $region36: #{tpu_custom_call.1} parent=5 // pred_fallthru
        _
      %p572 = scmp.le.s32.totalorder 2, %s17
      // Predicated region
      $region61: #{tpu_custom_call.1} parent=5 // pred_check
        %p573 = pneg %p572
      $region62: #{tpu_custom_call.1} parent=5 // pred_check_branch
        %575 = sbr.rel (%p573) target = $region64
      $region63: #{tpu_custom_call.1} parent=5 // pred_region
        %s576 = ssub.s32 %s17, 2
        // Predicated region
        $region65: #{tpu_custom_call.1} parent=63 // pred_check
          %p577 = pneg %p149
        $region66: #{tpu_custom_call.1} parent=63 // pred_check_branch
          %579 = sbr.rel (%p577) target = $region68
        $region67: #{tpu_custom_call.1} parent=63 // pred_region
          %s580 = sand.u32 %s134, 1
          %s581 = scalar_lea.sflag [#allocation7], %s580
          %s582 = sand.u32 %s134, 1
          %s583 = scalar_lea.vmem [#allocation11], %s582
          %584 = dma.done %s581, 16
        $region68: #{tpu_custom_call.1} parent=63 // pred_fallthru
          _
      $region64: #{tpu_custom_call.1} parent=5 // pred_fallthru
        _
    $region6: #{tpu_custom_call.1} parent=1 // loop_footer
      %s21 = sadd.s32 1, %s17
    $region7: #{tpu_custom_call.1} parent=1 // loop_footer_branch
      %16 = sbr.rel target = $region3
    $region8: #{tpu_custom_call.1} parent=1 // loop_exit
      _
    %585 = vsyncpa [#allocation6], 1
    %s586 = scalar_lea.sflag [#allocation6], 1
    %587 = vsyncpa %s586, 1
    %588 = vsyncpa [#allocation9], 1
    %589 = vsyncpa [#allocation7], 1
    %s590 = scalar_lea.sflag [#allocation7], 1
    %591 = vsyncpa %s590, 1

</llo_original>
